<compile_context>
chip_gen: v7x
topology: tpu7x:2x2x1
jax: 0.10.0
libtpu: 0.0.40
codegen_flags: <defaults>
</compile_context>

<pallas_src>
import functools

import jax
import jax.numpy as jnp
from jax import lax
from jax.experimental import pallas as pl
from jax.experimental.pallas import tpu as pltpu


def _layernorm_kernel(gamma_ref, beta_ref, x_ref, o_ref, *, eps, pack):
    """LayerNorm for one (block_rows, DL) tile.

    pack == 1: each row is one normalization group (DL == dim).
    pack  > 1: each 128-lane row holds `pack` consecutive groups of width
               DL // pack; per-group mean/var are recovered with a
               block-diagonal averaging matmul so all vector work stays
               lane-dense.
    """
    x = x_ref[...].astype(jnp.float32)                    # (TR, DL)
    g = gamma_ref[...].astype(jnp.float32)                # (1, DL) broadcast
    b = beta_ref[...].astype(jnp.float32)                 # (1, DL) broadcast

    if pack == 1:
        mean = jnp.mean(x, axis=-1, keepdims=True)        # (TR, 1)
        xc = x - mean
        var = jnp.mean(xc * xc, axis=-1, keepdims=True)   # biased, like torch
    else:
        dl = x.shape[-1]
        d = dl // pack
        # avg[i, j] = 1/d if lanes i and j belong to the same group, else 0.
        row = lax.broadcasted_iota(jnp.int32, (dl, dl), 0) // d
        col = lax.broadcasted_iota(jnp.int32, (dl, dl), 1) // d
        avg = (row == col).astype(jnp.float32) * (1.0 / d)
        # x @ avg broadcasts each group's mean across that group's lanes (MXU).
        mean = jnp.dot(x, avg, preferred_element_type=jnp.float32)
        xc = x - mean
        var = jnp.dot(xc * xc, avg, preferred_element_type=jnp.float32)

    inv = lax.rsqrt(var + eps)                            # EUP slot (cheap)
    o_ref[...] = (xc * inv * g + b).astype(o_ref.dtype)


def _round_up(a, m):
    return -(-a // m) * m


def _choose_row_block(n_rows, sub, target_rows, row_bytes,
                      split_bytes=128 * 1024, full_block_bytes=4 * 2 ** 20):
    """Pick (block_rows, padded_rows).

    Prefers a divisor of n_rows (no pad / slice HBM round trips); keeps the
    grid at >=2 steps for large inputs (v7x megacore + DMA/compute overlap);
    falls back to a single full block, then to padding, for awkward counts.
    """
    if n_rows % sub == 0:
        cap = min(target_rows, n_rows)
        if cap >= n_rows and n_rows >= 2 * sub and n_rows * row_bytes > split_bytes:
            cap = n_rows // 2                  # keep >=2 grid steps
        cap = max(sub, (cap // sub) * sub)
        t = cap
        while n_rows % t != 0:
            t -= sub
        return t, n_rows
    if n_rows * row_bytes <= full_block_bytes:
        # block_shape equal to the full array dims is exempt from the (8, 128)
        # divisibility rule, so one ragged full block needs no padding.
        return n_rows, n_rows
    # TODO(synk): mask the ragged last block in-kernel instead of padding; the
    # pad + slice below cost an extra HBM pass over x and the output.
    padded = _round_up(n_rows, sub)
    t = max(sub, (min(target_rows, padded) // sub) * sub)
    while padded % t != 0:
        t -= sub
    return t, padded


def layer_norm_pallas(x, gamma, beta, *, eps=1e-5, out_dtype=None,
                      target_block_bytes=2 * 2 ** 20):
    """LayerNorm over the last dim of x (any leading shape) via Pallas."""
    dim = x.shape[-1]
    lead = x.shape[:-1]
    out_dtype = x.dtype if out_dtype is None else jnp.dtype(out_dtype)

    x2 = x.reshape(-1, dim)
    n_rows = x2.shape[0]

    in_item = jnp.dtype(x.dtype).itemsize
    out_item = jnp.dtype(out_dtype).itemsize
    sublane = {4: 8, 2: 16, 1: 32}
    sub = max(sublane.get(in_item, 8), sublane.get(out_item, 8))

    # ---- lane packing for small dims (dim | 128): dense vregs & stores ------
    pack = 1
    if dim < 128 and 128 % dim == 0:
        cand = 128 // dim
        if n_rows % cand == 0 and (n_rows // cand) % sub == 0:
            pack = cand
    dl = dim * pack
    xp = x2.reshape(n_rows // pack, dl)        # contiguous -> free reshape
    n_prow = xp.shape[0]

    if pack > 1:
        gamma_l = jnp.tile(gamma.reshape(1, dim), (1, pack))
        beta_l = jnp.tile(beta.reshape(1, dim), (1, pack))
    else:
        gamma_l = gamma.reshape(1, dim)
        beta_l = beta.reshape(1, dim)

    # ---- block sizing from a bytes-per-step target ---------------------------
    row_bytes = dl * in_item
    target_rows = max(sub, target_block_bytes // max(1, row_bytes))
    tr, rows_p = _choose_row_block(n_prow, sub, target_rows, row_bytes)
    if rows_p != n_prow:
        # Zero rows normalize to `beta` and are sliced off below (var+eps > 0).
        xp = jnp.pad(xp, ((0, rows_p - n_prow), (0, 0)))

    # ---- VMEM budget: double-buffered in/out blocks + f32 temporaries --------
    blk_in = tr * dl * in_item
    blk_out = tr * dl * out_item
    blk_f32 = tr * dl * 4
    vmem_limit = int(min(64 * 2 ** 20,
                         max(32 * 2 ** 20,
                             2 * (blk_in + blk_out) + 6 * blk_f32 + (2 << 20))))

    n_elems = rows_p * dl
    cost = pl.CostEstimate(
        flops=10 * n_elems + (4 * n_elems * dl if pack > 1 else 0),
        transcendentals=n_elems if pack > 1 else rows_p,
        bytes_accessed=n_elems * (in_item + out_item) + 2 * dl * 4,
    )

    out = pl.pallas_call(
        functools.partial(_layernorm_kernel, eps=eps, pack=pack),
        out_shape=jax.ShapeDtypeStruct((rows_p, dl), out_dtype),
        grid_spec=pltpu.PrefetchScalarGridSpec(
            num_scalar_prefetch=0,
            grid=(rows_p // tr,),
            in_specs=[
                pl.BlockSpec((1, dl), lambda i: (0, 0)),     # gamma (resident)
                pl.BlockSpec((1, dl), lambda i: (0, 0)),     # beta  (resident)
                pl.BlockSpec((tr, dl), lambda i: (i, 0)),    # x row block
            ],
            out_specs=pl.BlockSpec((tr, dl), lambda i: (i, 0)),
        ),
        compiler_params=pltpu.CompilerParams(
            dimension_semantics=("parallel",),
            vmem_limit_bytes=vmem_limit,
        ),
        cost_estimate=cost,
    )(gamma_l, beta_l, xp)

    if rows_p != n_prow:
        out = out[:n_prow]
    return out.reshape(*lead, dim)


def pre_norm(x, gamma, beta, fn=None, *, eps=1e-5, **kwargs):
    """PreNorm.forward: fn(LayerNorm(x), **kwargs)."""
    y = layer_norm_pallas(x, gamma, beta, eps=eps)
    if fn is None:
        return y
    # TODO(synk): when `fn` starts with a matmul (ViT MLP / qkv projection),
    # fuse the LayerNorm into that matmul's Pallas kernel so `y` never makes an
    # HBM round trip; here `fn` is an opaque user sub-module, so it is applied
    # as a plain JAX callable.
    return fn(y, **kwargs)


def _layernorm_ref(x, gamma, beta, eps=1e-5):
    """Pure-JAX replica of torch.nn.LayerNorm for verification."""
    mean = jnp.mean(x, axis=-1, keepdims=True)
    var = jnp.mean((x - mean) ** 2, axis=-1, keepdims=True)
    return (x - mean) / jnp.sqrt(var + eps) * gamma + beta


if __name__ == "__main__":
    keys = jax.random.split(jax.random.PRNGKey(0), 10)

    # --- primary check: module-sized toy shapes with a wrapped fn ------------
    B, N, D = 2, 8, 32
    x = jax.random.normal(keys[0], (B, N, D), dtype=jnp.float32)
    gamma = 1.0 + 0.1 * jax.random.normal(keys[1], (D,), dtype=jnp.float32)
    beta = 0.1 * jax.random.normal(keys[2], (D,), dtype=jnp.float32)
    w_fn = jax.random.normal(keys[3], (D, D), dtype=jnp.float32) / (D ** 0.5)
    b_fn = 0.1 * jax.random.normal(keys[4], (D,), dtype=jnp.float32)
    fn = lambda y: y @ w_fn + b_fn

    out = jax.block_until_ready(pre_norm(x, gamma, beta, fn))
    ref = fn(_layernorm_ref(x, gamma, beta))
    assert out.shape == (B, N, D)
    assert jnp.allclose(out, ref, atol=1e-4, rtol=1e-4), "pre_norm mismatch"

    # --- lane-packed small-D path with a multi-step grid ---------------------
    x_big = jax.random.normal(keys[5], (2, 1024, D), dtype=jnp.float32)
    out_big = jax.block_until_ready(layer_norm_pallas(x_big, gamma, beta))
    ref_big = _layernorm_ref(x_big, gamma, beta)
    # slightly looser: per-group stats go through an MXU averaging matmul
    assert jnp.allclose(out_big, ref_big, atol=5e-3, rtol=5e-3), "packed mismatch"

    # --- ragged rows / odd feature dim (single full-block fallback) ----------
    D3 = 48
    x_odd = jax.random.normal(keys[6], (3, 7, D3), dtype=jnp.float32)
    g3 = 1.0 + 0.1 * jax.random.normal(keys[7], (D3,), dtype=jnp.float32)
    b3 = 0.1 * jax.random.normal(keys[8], (D3,), dtype=jnp.float32)
    out_odd = jax.block_until_ready(layer_norm_pallas(x_odd, g3, b3))
    ref_odd = _layernorm_ref(x_odd, g3, b3)
    assert jnp.allclose(out_odd, ref_odd, atol=1e-4, rtol=1e-4), "fallback mismatch"

    print("KERNEL_OK")
</pallas_src>

<mosaic_0001>
module attributes {stable_mosaic.version = 11 : i64} {
  func.func @_layernorm_kernel(%arg0: i32, %arg1: memref<1x32xf32, #tpu.memory_space<vmem>>, %arg2: memref<1x32xf32, #tpu.memory_space<vmem>>, %arg3: memref<16x32xf32, #tpu.memory_space<vmem>>, %arg4: memref<16x32xf32, #tpu.memory_space<vmem>>) attributes {dimension_semantics = [#tpu.dimension_semantics<parallel>], iteration_bounds = array<i64: 1>, scalar_prefetch = 0 : i64, scratch_operands = 0 : i64, tpu.core_type = #tpu.core_type<tc>, window_params = [{pipeline_mode = #tpu.pipeline_mode<synchronous>, transform_indices = @transform_0, window_bounds = array<i64: 1, 32>}, {pipeline_mode = #tpu.pipeline_mode<synchronous>, transform_indices = @transform_1, window_bounds = array<i64: 1, 32>}, {transform_indices = @transform_2, window_bounds = array<i64: 16, 32>}, {transform_indices = @transform_3, window_bounds = array<i64: 16, 32>}]} {
    %c0 = arith.constant 0 : index
    %c0_0 = arith.constant 0 : index
    %0 = vector.load %arg3[%c0, %c0_0] : memref<16x32xf32, #tpu.memory_space<vmem>>, vector<16x32xf32>
    %c0_1 = arith.constant 0 : index
    %c0_2 = arith.constant 0 : index
    %1 = vector.load %arg1[%c0_1, %c0_2] : memref<1x32xf32, #tpu.memory_space<vmem>>, vector<1x32xf32>
    %c0_3 = arith.constant 0 : index
    %c0_4 = arith.constant 0 : index
    %2 = vector.load %arg2[%c0_3, %c0_4] : memref<1x32xf32, #tpu.memory_space<vmem>>, vector<1x32xf32>
    %cst = arith.constant dense<0.000000e+00> : vector<16xf32>
    %3 = vector.multi_reduction <add>, %0, %cst [1] : vector<16x32xf32> to vector<16xf32>
    %4 = vector.shape_cast %3 : vector<16xf32> to vector<16x1xf32>
    %cst_5 = arith.constant 3.200000e+01 : f32
    %5 = vector.broadcast %cst_5 : f32 to vector<16x1xf32>
    %6 = arith.divf %4, %5 : vector<16x1xf32>
    %7 = vector.broadcast %6 : vector<16x1xf32> to vector<16x32xf32>
    %8 = arith.subf %0, %7 : vector<16x32xf32>
    %9 = arith.mulf %8, %8 : vector<16x32xf32>
    %cst_6 = arith.constant dense<0.000000e+00> : vector<16xf32>
    %10 = vector.multi_reduction <add>, %9, %cst_6 [1] : vector<16x32xf32> to vector<16xf32>
    %11 = vector.shape_cast %10 : vector<16xf32> to vector<16x1xf32>
    %cst_7 = arith.constant 3.200000e+01 : f32
    %12 = vector.broadcast %cst_7 : f32 to vector<16x1xf32>
    %13 = arith.divf %11, %12 : vector<16x1xf32>
    %cst_8 = arith.constant 9.99999974E-6 : f32
    %14 = vector.broadcast %cst_8 : f32 to vector<16x1xf32>
    %15 = arith.addf %13, %14 : vector<16x1xf32>
    %16 = math.rsqrt %15 : vector<16x1xf32>
    %17 = vector.broadcast %16 : vector<16x1xf32> to vector<16x32xf32>
    %18 = arith.mulf %8, %17 : vector<16x32xf32>
    %19 = vector.broadcast %1 : vector<1x32xf32> to vector<16x32xf32>
    %20 = arith.mulf %18, %19 : vector<16x32xf32>
    %21 = vector.broadcast %2 : vector<1x32xf32> to vector<16x32xf32>
    %22 = arith.addf %20, %21 : vector<16x32xf32>
    %c0_9 = arith.constant 0 : index
    %c0_10 = arith.constant 0 : index
    %23 = vector.load %arg4[%c0_9, %c0_10] : memref<16x32xf32, #tpu.memory_space<vmem>>, vector<16x32xf32>
    tpu.vector_store %arg4[%c0_9, %c0_10], %22 {strides = array<i32>} : memref<16x32xf32, #tpu.memory_space<vmem>>, vector<16x32xf32>,
    return
  }
  func.func @transform_0(%arg0: i32) -> (i32, i32) {
    %c0_i32 = arith.constant 0 : i32
    %c0_i32_0 = arith.constant 0 : i32
    %c0_i32_1 = arith.constant 0 : i32
    return %c0_i32, %c0_i32_0 : i32, i32
  }
  func.func @transform_1(%arg0: i32) -> (i32, i32) {
    %c0_i32 = arith.constant 0 : i32
    %c0_i32_0 = arith.constant 0 : i32
    %c0_i32_1 = arith.constant 0 : i32
    return %c0_i32, %c0_i32_0 : i32, i32
  }
  func.func @transform_2(%arg0: i32) -> (i32, i32) {
    %c0_i32 = arith.constant 0 : i32
    %c0_i32_0 = arith.constant 0 : i32
    return %arg0, %c0_i32 : i32, i32
  }
  func.func @transform_3(%arg0: i32) -> (i32, i32) {
    %c0_i32 = arith.constant 0 : i32
    %c0_i32_0 = arith.constant 0 : i32
    return %arg0, %c0_i32 : i32, i32
  }
}

</mosaic_0001>

<llo_original>
// kernel: tpu_custom_call.1
$region0: #{tpu_custom_call.1}
  #allocation0 [shape = 'u32[]', space=smem, size = 0x4, offset = 0x4, fixed_abs, tag = 'smem constant byte address 0x4 - core index']
  #allocation1 [shape = 'u32[144,128]{1,0:T(1,128)}', space=vmem, size = 0x12000, scoped, tag = 'internal scratch']
  %s0 = inlined_call_operand.hbm [shape: f32[1,32], index: 0, kind: input, shape index: {}]
  %s1 = inlined_call_operand.vmem [shape: f32[1,32], index: 1, kind: input, shape index: {}]
  %s2 = inlined_call_operand.hbm [shape: f32[16,32], index: 2, kind: input, shape index: {}]
  %s3 = inlined_call_operand.hbm [shape: f32[16,32], index: 3, kind: output, shape index: {}]
  %s4 = sld [smem:[#allocation0]]
  $region30: #{tpu_custom_call.1} parent=0
    _
  %s6 = ssub.s32 1, %s4
  %s7 = scalar_select 0, %s6, %s4
  $region1: #{tpu_custom_call.1} parent=0
    #allocation2 [shape = 'u8[512]{0}', space=vmem, size = 0x400, scoped, tag = 'input window, operand 0, single buffered']
    #allocation3 [shape = 's32[1]{0}', space=sflag, size = 0x4, scoped, tag = 'scoped memory for tpu_custom_call.1']
    #allocation4 [shape = 's32[1]{0}', space=sflag, size = 0x4, scoped, tag = 'scoped memory for tpu_custom_call.1']
    #allocation5 [shape = 'u8[8192]{0}', space=vmem, size = 0x2000, scoped, tag = 'input window, operand 2, single buffered']
    #allocation6 [shape = 's32[1]{0}', space=sflag, size = 0x4, scoped, tag = 'scoped memory for tpu_custom_call.1']
    #allocation7 [shape = 'u8[8192]{0}', space=vmem, size = 0x2000, scoped, tag = 'output window, operand 0, single buffered']
    %8 = vsyncpa [#allocation3], 0
    %9 = vsyncpa [#allocation6], 0
    %10 = vsyncpa [#allocation4], 0
    // Predicated region
    $region2: #{tpu_custom_call.1} parent=1 // pred_check
      _
    $region3: #{tpu_custom_call.1} parent=1 // pred_check_branch
      %12 = sbr.rel (0) target = $region5
    $region4: #{tpu_custom_call.1} parent=1 // pred_region
      %s14 = ssub.s32 16, 16
      %15 = vsyncadd [#allocation3], %s14
      %s17 = sshll.u32 [#allocation2], 4
      %s18 = int_to_ptr.vmem [resolvable:$true] %s17
      %20 = dma.hbm_to_vmem [thread:$0]  %s0, 16, %s18, [#allocation3]
    $region5: #{tpu_custom_call.1} parent=1 // pred_fallthru
      _
    // Predicated region
    $region6: #{tpu_custom_call.1} parent=1 // pred_check
      _
    $region7: #{tpu_custom_call.1} parent=1 // pred_check_branch
      %22 = sbr.rel (0) target = $region9
    $region8: #{tpu_custom_call.1} parent=1 // pred_region
      _
    $region9: #{tpu_custom_call.1} parent=1 // pred_fallthru
      _
    // Predicated region
    $region10: #{tpu_custom_call.1} parent=1 // pred_check
      _
    $region11: #{tpu_custom_call.1} parent=1 // pred_check_branch
      %24 = sbr.rel (0) target = $region13
    $region12: #{tpu_custom_call.1} parent=1 // pred_region
      %s26 = ssub.s32 256, 256
      %27 = vsyncadd [#allocation6], %s26
      %s28 = sshll.u32 [#allocation5], 4
      %s29 = int_to_ptr.vmem [resolvable:$true] %s28
      %34 = dma.hbm_to_vmem [thread:$0]  %s2, 256, %s29, [#allocation6], 128, 128, 8
    $region13: #{tpu_custom_call.1} parent=1 // pred_fallthru
      _
    // Predicated region
    $region14: #{tpu_custom_call.1} parent=1 // pred_check
      _
    $region15: #{tpu_custom_call.1} parent=1 // pred_check_branch
      %36 = sbr.rel (0) target = $region17
    $region16: #{tpu_custom_call.1} parent=1 // pred_region
      %37 = dma.done [#allocation3], 16
    $region17: #{tpu_custom_call.1} parent=1 // pred_fallthru
      _
    // Predicated region
    $region18: #{tpu_custom_call.1} parent=1 // pred_check
      _
    $region19: #{tpu_custom_call.1} parent=1 // pred_check_branch
      %39 = sbr.rel (0) target = $region21
    $region20: #{tpu_custom_call.1} parent=1 // pred_region
      %40 = dma.done [#allocation6], 256
    $region21: #{tpu_custom_call.1} parent=1 // pred_fallthru
      _
    %v41 = vld [vmem:[#allocation5] sm:$0xff]
    %v42 = vld [vmem:[#allocation5 + $0x8] sm:$0xff]
    %v43 = vld [vmem:[#allocation2] sm:$0x1]
    %v44 = vld [vmem:[%s1] sm:$0x1]
    %vm45 = vcmask 261120
    %v46 = vsel %vm45, %v41, 0.0
    %47 = vadd.xlane.f32.xlu0 %v46
    %v48 = vpop.xlane.xlu0 %47
    %v49 = vsel %vm45, %v42, 0.0
    %50 = vadd.xlane.f32.xlu0 %v49
    %v51 = vpop.xlane.xlu0 %50
    %v52 = vrcp.pop 32.0
    %v53 = vmul.f32 %v48, %v52
    %v54 = vmul.f32 %v51, %v52
    %v55 = vsub.f32 %v41, %v53
    %v56 = vsub.f32 %v42, %v54
    %v57 = vmul.f32 %v55, %v55
    %v58 = vmul.f32 %v56, %v56
    %v59 = vsel %vm45, %v57, 0.0
    %60 = vadd.xlane.f32.xlu0 %v59
    %v61 = vpop.xlane.xlu0 %60
    %v62 = vsel %vm45, %v58, 0.0
    %63 = vadd.xlane.f32.xlu0 %v62
    %v64 = vpop.xlane.xlu0 %63
    %v65 = vmul.f32 %v61, %v52
    %v66 = vmul.f32 %v64, %v52
    %v67 = vadd.f32 %v65, 1e-05
    %v68 = vadd.f32 %v66, 1e-05
    %v69 = vrsqrt.pop %v67
    %v70 = vrsqrt.pop %v68
    %v71 = vmul.f32 %v55, %v69
    %v72 = vmul.f32 %v56, %v70
    %v74 = vlaneseq
    %v75 = vshrl.u32 %v74, 7
    %v76 = vsub.s32 0, %v75
    %v77 = vrot.slane %v43, %v76
    %v79 = vmul.f32 %v71, %v77
    %v80 = vmul.f32 %v72, %v77
    %v82 = vlaneseq
    %v83 = vshrl.u32 %v82, 7
    %v84 = vsub.s32 0, %v83
    %v85 = vrot.slane %v44, %v84
    %v87 = vadd.f32 %v79, %v85
    %v88 = vadd.f32 %v80, %v85
    %89 = vst.msk [vmem:[#allocation7] sm:$0xff] %vm45, %v87
    %90 = vst.msk [vmem:[#allocation7 + $0x8] sm:$0xff] %vm45, %v88
    // Predicated region
    $region22: #{tpu_custom_call.1} parent=1 // pred_check
      _
    $region23: #{tpu_custom_call.1} parent=1 // pred_check_branch
      %92 = sbr.rel (0) target = $region25
    $region24: #{tpu_custom_call.1} parent=1 // pred_region
      %s94 = ssub.s32 256, 256
      %95 = vsyncadd [#allocation4], %s94
      %s96 = sshll.u32 [#allocation7], 4
      %s97 = int_to_ptr.vmem [resolvable:$true] %s96
      %102 = dma.vmem_to_hbm [thread:$0]  %s97, 256, %s3, [#allocation4], 128, 128, 8
    $region25: #{tpu_custom_call.1} parent=1 // pred_fallthru
      _
    // Predicated region
    $region26: #{tpu_custom_call.1} parent=1 // pred_check
      _
    $region27: #{tpu_custom_call.1} parent=1 // pred_check_branch
      %104 = sbr.rel (0) target = $region29
    $region28: #{tpu_custom_call.1} parent=1 // pred_region
      %105 = dma.done [#allocation4], 256
    $region29: #{tpu_custom_call.1} parent=1 // pred_fallthru
      _
    %106 = vsyncpa [#allocation3], 1
    %107 = vsyncpa [#allocation6], 1
    %108 = vsyncpa [#allocation4], 1

</llo_original>
